<compile_context>
chip_gen: v7x
topology: tpu7x:2x2x1
jax: 0.10.0
libtpu: 0.0.40
codegen_flags: <defaults>
</compile_context>

<pallas_src>
import jax
import jax.numpy as jnp
from jax.experimental import pallas as pl
from jax.experimental.pallas import tpu as pltpu


def _round_up(x, m):
    return ((x + m - 1) // m) * m


def _default_vmem_limit():
    # Per-generation VMEM limit with headroom for Mosaic-internal scratch:
    # ~90 MiB on v5e/v6e (128 MiB physical), ~45 MiB on v7x (64 MiB physical).
    try:
        cap = int(pltpu.get_tpu_info().vmem_capacity_bytes)
    except Exception:
        cap = 128 * 1024 * 1024
    return max(32 * 1024 * 1024, min(96 * 1024 * 1024, int(cap * 0.7)))


def feater_kernel(x1_ref, x2_ref, w_ref, b_ref, o_ref, lhs_ref):
    """One (TB, TN) output tile of Softplus(Bilinear(x1, x2)).

    x1_ref : (TB, D1)      compute dtype
    x2_ref : (TB, D2)      float32
    w_ref  : (D1*D2, TN)   compute dtype   (W[o, i, j] stored at row j*D1+i)
    b_ref  : (1, TN)       float32
    o_ref  : (TB, TN)      out dtype
    lhs_ref: (TB, D1*D2)   compute dtype   VMEM scratch (scaled LHS)
    """
    d1 = x1_ref.shape[1]
    d2 = x2_ref.shape[1]

    x1 = x1_ref[...].astype(jnp.float32)
    x2 = x2_ref[...]  # float32

    # Build the scaled LHS:  lhs[b, j*D1 + i] = x1[b, i] * x2[b, j]
    # One (TB, D1) VPU multiply + static-lane-slice store per j.
    # NOTE: full unroll is fine for the small D2 this module uses; switch to a
    # partially-unrolled lax.fori_loop for very large D2.
    for j in range(d2):
        lhs_ref[:, j * d1:(j + 1) * d1] = (
            x1 * x2[:, j:j + 1]).astype(lhs_ref.dtype)

    # Single MXU matmul with K = D1*D2; accumulation stays in the MXU (f32).
    z = jnp.dot(lhs_ref[...], w_ref[...], preferred_element_type=jnp.float32)
    z = z + b_ref[...]

    # PyTorch Softplus (beta=1, threshold=20): z > 20 -> z, else log1p(exp(z)).
    sp = jnp.where(z > 20.0, z, jnp.log1p(jnp.exp(jnp.minimum(z, 20.0))))
    o_ref[...] = sp.astype(o_ref.dtype)


def _choose_tiles(b_hint, d1, d2, cpad, comp_size, out_size, vmem_limit,
                  row_align):
    """Pick (TB, TN) so all buffers fit `vmem_limit` with headroom.

    The pipeline double-buffers every input even with a constant index_map, so
    the resident weight is counted twice (review feedback).
    """
    k = d1 * d2
    budget = int(vmem_limit * 0.75)

    # TN: largest multiple of 128 that divides Cpad and keeps the
    # (double-buffered) weight tile within half the budget.
    m = cpad // 128
    tn = 128
    for div in range(m, 0, -1):
        if m % div == 0 and 2 * k * (128 * div) * comp_size <= budget // 2:
            tn = 128 * div
            break

    w_cost = 2 * k * tn * comp_size + 2 * tn * 4          # weight + bias
    per_row = (k * comp_size                              # LHS scratch (x1)
               + 2 * (d1 * comp_size + d2 * 4)            # x1, x2 (dbl-buf)
               + 2 * tn * out_size)                       # out tile (dbl-buf)
    remaining = max(budget - w_cost, per_row * row_align)
    tb = remaining // per_row
    # Cap TB so the (TB, TN) f32 post-matmul value does not blow the vreg file
    # (<= ~256 rows at TN=128, scaled down for wider TN).
    tb = min(tb, max(row_align, (256 * 128) // tn))
    tb = max(row_align, (tb // row_align) * row_align)
    tb = min(tb, b_hint)
    return int(tb), int(tn)


class FeaterPallas:
    """JAX/Pallas equivalent of `Feater` (nn.Bilinear + nn.Softplus).

    The weight is re-laid-out ONCE at construction to (D1*D2, Cpad) so every
    forward pass is a single K = D1*D2 MXU matmul per (batch, out) tile.
    compute_dtype=bfloat16 is the fast (native MXU) path; float32 is the
    slower emulated-MXU path kept for strict numerics.
    """

    def __init__(self, weight, bias, *, compute_dtype=jnp.bfloat16,
                 out_dtype=jnp.float32, block_batch=None, block_out=None,
                 vmem_limit_bytes=None):
        c, d1, d2 = weight.shape
        assert bias.shape == (c,)
        self.d1, self.d2, self.c = int(d1), int(d2), int(c)
        self.compute_dtype = jnp.dtype(compute_dtype)
        self.out_dtype = jnp.dtype(out_dtype)
        self.cpad = _round_up(self.c, 128)                # lane-dense output
        # (C, D1, D2) -> (D2, D1, C) -> (D1*D2, Cpad); row index j*D1 + i
        # matches the scaled-LHS layout built in the kernel.  Hoisted out of
        # the per-call path.
        w_k = jnp.transpose(weight, (2, 1, 0)).reshape(self.d2 * self.d1,
                                                       self.c)
        self.w_k = jnp.pad(
            w_k, ((0, 0), (0, self.cpad - self.c))).astype(self.compute_dtype)
        self.b_k = jnp.pad(
            bias, (0, self.cpad - self.c)).reshape(1, self.cpad).astype(
                jnp.float32)
        self.vmem_limit = int(vmem_limit_bytes or _default_vmem_limit())
        self.block_batch = block_batch
        self.block_out = block_out
        # bf16 packs 2 rows per sublane -> batch tiles rounded to 16.
        self.row_align = 16 if self.compute_dtype.itemsize < 4 else 8

    def __call__(self, x1, x2):
        b, d1 = x1.shape
        b2, d2 = x2.shape
        assert b == b2 and d1 == self.d1 and d2 == self.d2
        k = self.d1 * self.d2

        b_hint = _round_up(b, self.row_align)
        tb, tn = _choose_tiles(b_hint, self.d1, self.d2, self.cpad,
                               self.compute_dtype.itemsize,
                               self.out_dtype.itemsize,
                               self.vmem_limit, self.row_align)
        if self.block_batch is not None:
            tb = int(self.block_batch)
        if self.block_out is not None:
            tn = int(self.block_out)
        assert tb % self.row_align == 0
        assert tn % 128 == 0 and self.cpad % tn == 0

        b_pad = _round_up(b, tb)
        x1_k = x1.astype(self.compute_dtype)
        x2_k = x2.astype(jnp.float32)
        if b_pad != b:
            x1_k = jnp.pad(x1_k, ((0, b_pad - b), (0, 0)))
            x2_k = jnp.pad(x2_k, ((0, b_pad - b), (0, 0)))

        out = pl.pallas_call(
            feater_kernel,
            out_shape=jax.ShapeDtypeStruct((b_pad, self.cpad),
                                           self.out_dtype),
            grid_spec=pltpu.PrefetchScalarGridSpec(
                num_scalar_prefetch=0,
                grid=(b_pad // tb, self.cpad // tn),
                in_specs=[
                    pl.BlockSpec((tb, self.d1), lambda i, n: (i, 0)),  # x1
                    pl.BlockSpec((tb, self.d2), lambda i, n: (i, 0)),  # x2
                    pl.BlockSpec((k, tn), lambda i, n: (0, n)),        # W
                    pl.BlockSpec((1, tn), lambda i, n: (0, n)),        # bias
                ],
                out_specs=pl.BlockSpec((tb, tn), lambda i, n: (i, n)),
                scratch_shapes=[pltpu.VMEM((tb, k), self.compute_dtype)],
            ),
            compiler_params=pltpu.CompilerParams(
                dimension_semantics=("parallel", "parallel"),
                vmem_limit_bytes=self.vmem_limit,
            ),
        )(x1_k, x2_k, self.w_k, self.b_k)

        return out[:b, :self.c]


def reference_forward(x1, x2, weight, bias):
    z = jnp.einsum('bi,oij,bj->bo', x1, weight, x2,
                   precision=jax.lax.Precision.HIGHEST) + bias[None, :]
    return jnp.where(z > 20.0, z, jnp.log1p(jnp.exp(jnp.minimum(z, 20.0))))


if __name__ == "__main__":
    key = jax.random.PRNGKey(0)
    k1, k2, kw, kb = jax.random.split(key, 4)

    batch = 20
    in_dims = (32, 16)
    out_dim = 20

    x1 = jax.random.normal(k1, (batch, in_dims[0]), dtype=jnp.float32)
    x2 = jax.random.normal(k2, (batch, in_dims[1]), dtype=jnp.float32)

    # nn.Bilinear init: weight (out_dim, in1, in2), bias (out_dim,),
    # uniform(-bound, bound) with bound = 1/sqrt(in1_features).
    bound = 1.0 / float(jnp.sqrt(in_dims[0]))
    weight = jax.random.uniform(kw, (out_dim, in_dims[0], in_dims[1]),
                                jnp.float32, minval=-bound, maxval=bound)
    bias = jax.random.uniform(kb, (out_dim,), jnp.float32,
                              minval=-bound, maxval=bound)

    ref = reference_forward(x1, x2, weight, bias)

    # Default fast path: bf16 x1/W on the MXU, f32 accumulation, auto tiles.
    layer = FeaterPallas(weight, bias)
    out = jax.block_until_ready(layer(x1, x2))
    assert out.shape == (batch, out_dim)
    assert bool(jnp.all(jnp.isfinite(out)))
    assert jnp.allclose(out, ref, atol=1e-1, rtol=1e-1)

    # Strict f32 path with a small batch tile (exercises the multi-step grid
    # and batch/out-dim padding).
    layer_f32 = FeaterPallas(weight, bias, compute_dtype=jnp.float32,
                             block_batch=8)
    out_f32 = jax.block_until_ready(layer_f32(x1, x2))
    assert out_f32.shape == (batch, out_dim)
    assert jnp.allclose(out_f32, ref, atol=1e-3, rtol=1e-3)

    print("KERNEL_OK")
</pallas_src>

<mosaic_0001>
module attributes {stable_mosaic.version = 11 : i64} {
  func.func @feater_kernel(%arg0: i32, %arg1: i32, %arg2: memref<32x32xbf16, #tpu.memory_space<vmem>>, %arg3: memref<32x16xf32, #tpu.memory_space<vmem>>, %arg4: memref<512x128xbf16, #tpu.memory_space<vmem>>, %arg5: memref<1x128xf32, #tpu.memory_space<vmem>>, %arg6: memref<32x128xf32, #tpu.memory_space<vmem>>, %arg7: memref<32x512xbf16, #tpu.memory_space<vmem>>) attributes {dimension_semantics = [#tpu.dimension_semantics<parallel>, #tpu.dimension_semantics<parallel>], iteration_bounds = array<i64: 1, 1>, scalar_prefetch = 0 : i64, scratch_operands = 1 : i64, tpu.core_type = #tpu.core_type<tc>, window_params = [{transform_indices = @transform_0, window_bounds = array<i64: 32, 32>}, {transform_indices = @transform_1, window_bounds = array<i64: 32, 16>}, {transform_indices = @transform_2, window_bounds = array<i64: 512, 128>}, {transform_indices = @transform_3, window_bounds = array<i64: 1, 128>}, {transform_indices = @transform_4, window_bounds = array<i64: 32, 128>}]} {
    %c0 = arith.constant 0 : index
    %c0_0 = arith.constant 0 : index
    %0 = vector.load %arg2[%c0, %c0_0] : memref<32x32xbf16, #tpu.memory_space<vmem>>, vector<32x32xbf16>
    %1 = arith.extf %0 : vector<32x32xbf16> to vector<32x32xf32>
    %c0_1 = arith.constant 0 : index
    %c0_2 = arith.constant 0 : index
    %2 = vector.load %arg3[%c0_1, %c0_2] : memref<32x16xf32, #tpu.memory_space<vmem>>, vector<32x16xf32>
    %3 = vector.extract_strided_slice %2 {offsets = [0, 0], sizes = [32, 1], strides = [1, 1]} : vector<32x16xf32> to vector<32x1xf32>
    %4 = vector.broadcast %3 : vector<32x1xf32> to vector<32x32xf32>
    %5 = arith.mulf %1, %4 : vector<32x32xf32>
    %6 = arith.truncf %5 : vector<32x32xf32> to vector<32x32xbf16>
    %c0_3 = arith.constant 0 : index
    %c0_4 = arith.constant 0 : index
    %7 = vector.load %arg7[%c0_3, %c0_4] : memref<32x512xbf16, #tpu.memory_space<vmem>>, vector<32x32xbf16>
    tpu.vector_store %arg7[%c0_3, %c0_4], %6 {strides = array<i32>} : memref<32x512xbf16, #tpu.memory_space<vmem>>, vector<32x32xbf16>,
    %8 = vector.extract_strided_slice %2 {offsets = [0, 1], sizes = [32, 1], strides = [1, 1]} : vector<32x16xf32> to vector<32x1xf32>
    %9 = vector.broadcast %8 : vector<32x1xf32> to vector<32x32xf32>
    %10 = arith.mulf %1, %9 : vector<32x32xf32>
    %11 = arith.truncf %10 : vector<32x32xf32> to vector<32x32xbf16>
    %c0_5 = arith.constant 0 : index
    %c32 = arith.constant 32 : index
    %12 = vector.load %arg7[%c0_5, %c32] : memref<32x512xbf16, #tpu.memory_space<vmem>>, vector<32x32xbf16>
    tpu.vector_store %arg7[%c0_5, %c32], %11 {strides = array<i32>} : memref<32x512xbf16, #tpu.memory_space<vmem>>, vector<32x32xbf16>,
    %13 = vector.extract_strided_slice %2 {offsets = [0, 2], sizes = [32, 1], strides = [1, 1]} : vector<32x16xf32> to vector<32x1xf32>
    %14 = vector.broadcast %13 : vector<32x1xf32> to vector<32x32xf32>
    %15 = arith.mulf %1, %14 : vector<32x32xf32>
    %16 = arith.truncf %15 : vector<32x32xf32> to vector<32x32xbf16>
    %c0_6 = arith.constant 0 : index
    %c64 = arith.constant 64 : index
    %17 = vector.load %arg7[%c0_6, %c64] : memref<32x512xbf16, #tpu.memory_space<vmem>>, vector<32x32xbf16>
    tpu.vector_store %arg7[%c0_6, %c64], %16 {strides = array<i32>} : memref<32x512xbf16, #tpu.memory_space<vmem>>, vector<32x32xbf16>,
    %18 = vector.extract_strided_slice %2 {offsets = [0, 3], sizes = [32, 1], strides = [1, 1]} : vector<32x16xf32> to vector<32x1xf32>
    %19 = vector.broadcast %18 : vector<32x1xf32> to vector<32x32xf32>
    %20 = arith.mulf %1, %19 : vector<32x32xf32>
    %21 = arith.truncf %20 : vector<32x32xf32> to vector<32x32xbf16>
    %c0_7 = arith.constant 0 : index
    %c96 = arith.constant 96 : index
    %22 = vector.load %arg7[%c0_7, %c96] : memref<32x512xbf16, #tpu.memory_space<vmem>>, vector<32x32xbf16>
    tpu.vector_store %arg7[%c0_7, %c96], %21 {strides = array<i32>} : memref<32x512xbf16, #tpu.memory_space<vmem>>, vector<32x32xbf16>,
    %23 = vector.extract_strided_slice %2 {offsets = [0, 4], sizes = [32, 1], strides = [1, 1]} : vector<32x16xf32> to vector<32x1xf32>
    %24 = vector.broadcast %23 : vector<32x1xf32> to vector<32x32xf32>
    %25 = arith.mulf %1, %24 : vector<32x32xf32>
    %26 = arith.truncf %25 : vector<32x32xf32> to vector<32x32xbf16>
    %c0_8 = arith.constant 0 : index
    %c128 = arith.constant 128 : index
    %27 = vector.load %arg7[%c0_8, %c128] : memref<32x512xbf16, #tpu.memory_space<vmem>>, vector<32x32xbf16>
    tpu.vector_store %arg7[%c0_8, %c128], %26 {strides = array<i32>} : memref<32x512xbf16, #tpu.memory_space<vmem>>, vector<32x32xbf16>,
    %28 = vector.extract_strided_slice %2 {offsets = [0, 5], sizes = [32, 1], strides = [1, 1]} : vector<32x16xf32> to vector<32x1xf32>
    %29 = vector.broadcast %28 : vector<32x1xf32> to vector<32x32xf32>
    %30 = arith.mulf %1, %29 : vector<32x32xf32>
    %31 = arith.truncf %30 : vector<32x32xf32> to vector<32x32xbf16>
    %c0_9 = arith.constant 0 : index
    %c160 = arith.constant 160 : index
    %32 = vector.load %arg7[%c0_9, %c160] : memref<32x512xbf16, #tpu.memory_space<vmem>>, vector<32x32xbf16>
    tpu.vector_store %arg7[%c0_9, %c160], %31 {strides = array<i32>} : memref<32x512xbf16, #tpu.memory_space<vmem>>, vector<32x32xbf16>,
    %33 = vector.extract_strided_slice %2 {offsets = [0, 6], sizes = [32, 1], strides = [1, 1]} : vector<32x16xf32> to vector<32x1xf32>
    %34 = vector.broadcast %33 : vector<32x1xf32> to vector<32x32xf32>
    %35 = arith.mulf %1, %34 : vector<32x32xf32>
    %36 = arith.truncf %35 : vector<32x32xf32> to vector<32x32xbf16>
    %c0_10 = arith.constant 0 : index
    %c192 = arith.constant 192 : index
    %37 = vector.load %arg7[%c0_10, %c192] : memref<32x512xbf16, #tpu.memory_space<vmem>>, vector<32x32xbf16>
    tpu.vector_store %arg7[%c0_10, %c192], %36 {strides = array<i32>} : memref<32x512xbf16, #tpu.memory_space<vmem>>, vector<32x32xbf16>,
    %38 = vector.extract_strided_slice %2 {offsets = [0, 7], sizes = [32, 1], strides = [1, 1]} : vector<32x16xf32> to vector<32x1xf32>
    %39 = vector.broadcast %38 : vector<32x1xf32> to vector<32x32xf32>
    %40 = arith.mulf %1, %39 : vector<32x32xf32>
    %41 = arith.truncf %40 : vector<32x32xf32> to vector<32x32xbf16>
    %c0_11 = arith.constant 0 : index
    %c224 = arith.constant 224 : index
    %42 = vector.load %arg7[%c0_11, %c224] : memref<32x512xbf16, #tpu.memory_space<vmem>>, vector<32x32xbf16>
    tpu.vector_store %arg7[%c0_11, %c224], %41 {strides = array<i32>} : memref<32x512xbf16, #tpu.memory_space<vmem>>, vector<32x32xbf16>,
    %43 = vector.extract_strided_slice %2 {offsets = [0, 8], sizes = [32, 1], strides = [1, 1]} : vector<32x16xf32> to vector<32x1xf32>
    %44 = vector.broadcast %43 : vector<32x1xf32> to vector<32x32xf32>
    %45 = arith.mulf %1, %44 : vector<32x32xf32>
    %46 = arith.truncf %45 : vector<32x32xf32> to vector<32x32xbf16>
    %c0_12 = arith.constant 0 : index
    %c256 = arith.constant 256 : index
    %47 = vector.load %arg7[%c0_12, %c256] : memref<32x512xbf16, #tpu.memory_space<vmem>>, vector<32x32xbf16>
    tpu.vector_store %arg7[%c0_12, %c256], %46 {strides = array<i32>} : memref<32x512xbf16, #tpu.memory_space<vmem>>, vector<32x32xbf16>,
    %48 = vector.extract_strided_slice %2 {offsets = [0, 9], sizes = [32, 1], strides = [1, 1]} : vector<32x16xf32> to vector<32x1xf32>
    %49 = vector.broadcast %48 : vector<32x1xf32> to vector<32x32xf32>
    %50 = arith.mulf %1, %49 : vector<32x32xf32>
    %51 = arith.truncf %50 : vector<32x32xf32> to vector<32x32xbf16>
    %c0_13 = arith.constant 0 : index
    %c288 = arith.constant 288 : index
    %52 = vector.load %arg7[%c0_13, %c288] : memref<32x512xbf16, #tpu.memory_space<vmem>>, vector<32x32xbf16>
    tpu.vector_store %arg7[%c0_13, %c288], %51 {strides = array<i32>} : memref<32x512xbf16, #tpu.memory_space<vmem>>, vector<32x32xbf16>,
    %53 = vector.extract_strided_slice %2 {offsets = [0, 10], sizes = [32, 1], strides = [1, 1]} : vector<32x16xf32> to vector<32x1xf32>
    %54 = vector.broadcast %53 : vector<32x1xf32> to vector<32x32xf32>
    %55 = arith.mulf %1, %54 : vector<32x32xf32>
    %56 = arith.truncf %55 : vector<32x32xf32> to vector<32x32xbf16>
    %c0_14 = arith.constant 0 : index
    %c320 = arith.constant 320 : index
    %57 = vector.load %arg7[%c0_14, %c320] : memref<32x512xbf16, #tpu.memory_space<vmem>>, vector<32x32xbf16>
    tpu.vector_store %arg7[%c0_14, %c320], %56 {strides = array<i32>} : memref<32x512xbf16, #tpu.memory_space<vmem>>, vector<32x32xbf16>,
    %58 = vector.extract_strided_slice %2 {offsets = [0, 11], sizes = [32, 1], strides = [1, 1]} : vector<32x16xf32> to vector<32x1xf32>
    %59 = vector.broadcast %58 : vector<32x1xf32> to vector<32x32xf32>
    %60 = arith.mulf %1, %59 : vector<32x32xf32>
    %61 = arith.truncf %60 : vector<32x32xf32> to vector<32x32xbf16>
    %c0_15 = arith.constant 0 : index
    %c352 = arith.constant 352 : index
    %62 = vector.load %arg7[%c0_15, %c352] : memref<32x512xbf16, #tpu.memory_space<vmem>>, vector<32x32xbf16>
    tpu.vector_store %arg7[%c0_15, %c352], %61 {strides = array<i32>} : memref<32x512xbf16, #tpu.memory_space<vmem>>, vector<32x32xbf16>,
    %63 = vector.extract_strided_slice %2 {offsets = [0, 12], sizes = [32, 1], strides = [1, 1]} : vector<32x16xf32> to vector<32x1xf32>
    %64 = vector.broadcast %63 : vector<32x1xf32> to vector<32x32xf32>
    %65 = arith.mulf %1, %64 : vector<32x32xf32>
    %66 = arith.truncf %65 : vector<32x32xf32> to vector<32x32xbf16>
    %c0_16 = arith.constant 0 : index
    %c384 = arith.constant 384 : index
    %67 = vector.load %arg7[%c0_16, %c384] : memref<32x512xbf16, #tpu.memory_space<vmem>>, vector<32x32xbf16>
    tpu.vector_store %arg7[%c0_16, %c384], %66 {strides = array<i32>} : memref<32x512xbf16, #tpu.memory_space<vmem>>, vector<32x32xbf16>,
    %68 = vector.extract_strided_slice %2 {offsets = [0, 13], sizes = [32, 1], strides = [1, 1]} : vector<32x16xf32> to vector<32x1xf32>
    %69 = vector.broadcast %68 : vector<32x1xf32> to vector<32x32xf32>
    %70 = arith.mulf %1, %69 : vector<32x32xf32>
    %71 = arith.truncf %70 : vector<32x32xf32> to vector<32x32xbf16>
    %c0_17 = arith.constant 0 : index
    %c416 = arith.constant 416 : index
    %72 = vector.load %arg7[%c0_17, %c416] : memref<32x512xbf16, #tpu.memory_space<vmem>>, vector<32x32xbf16>
    tpu.vector_store %arg7[%c0_17, %c416], %71 {strides = array<i32>} : memref<32x512xbf16, #tpu.memory_space<vmem>>, vector<32x32xbf16>,
    %73 = vector.extract_strided_slice %2 {offsets = [0, 14], sizes = [32, 1], strides = [1, 1]} : vector<32x16xf32> to vector<32x1xf32>
    %74 = vector.broadcast %73 : vector<32x1xf32> to vector<32x32xf32>
    %75 = arith.mulf %1, %74 : vector<32x32xf32>
    %76 = arith.truncf %75 : vector<32x32xf32> to vector<32x32xbf16>
    %c0_18 = arith.constant 0 : index
    %c448 = arith.constant 448 : index
    %77 = vector.load %arg7[%c0_18, %c448] : memref<32x512xbf16, #tpu.memory_space<vmem>>, vector<32x32xbf16>
    tpu.vector_store %arg7[%c0_18, %c448], %76 {strides = array<i32>} : memref<32x512xbf16, #tpu.memory_space<vmem>>, vector<32x32xbf16>,
    %78 = vector.extract_strided_slice %2 {offsets = [0, 15], sizes = [32, 1], strides = [1, 1]} : vector<32x16xf32> to vector<32x1xf32>
    %79 = vector.broadcast %78 : vector<32x1xf32> to vector<32x32xf32>
    %80 = arith.mulf %1, %79 : vector<32x32xf32>
    %81 = arith.truncf %80 : vector<32x32xf32> to vector<32x32xbf16>
    %c0_19 = arith.constant 0 : index
    %c480 = arith.constant 480 : index
    %82 = vector.load %arg7[%c0_19, %c480] : memref<32x512xbf16, #tpu.memory_space<vmem>>, vector<32x32xbf16>
    tpu.vector_store %arg7[%c0_19, %c480], %81 {strides = array<i32>} : memref<32x512xbf16, #tpu.memory_space<vmem>>, vector<32x32xbf16>,
    %c0_20 = arith.constant 0 : index
    %c0_21 = arith.constant 0 : index
    %83 = vector.load %arg7[%c0_20, %c0_21] : memref<32x512xbf16, #tpu.memory_space<vmem>>, vector<32x512xbf16>
    %c0_22 = arith.constant 0 : index
    %c0_23 = arith.constant 0 : index
    %84 = vector.load %arg4[%c0_22, %c0_23] : memref<512x128xbf16, #tpu.memory_space<vmem>>, vector<512x128xbf16>
    %cst = arith.constant dense<0.000000e+00> : vector<32x128xf32>
    %85 = tpu.matmul %83, %84, %cst {dimension_numbers = #tpu.dot_dimension_numbers<[1], [0], [0], [1], [0, 0, 1, 1], [], []>} : vector<32x512xbf16>, vector<512x128xbf16>, vector<32x128xf32> -> vector<32x128xf32>
    %c0_24 = arith.constant 0 : index
    %c0_25 = arith.constant 0 : index
    %86 = vector.load %arg5[%c0_24, %c0_25] : memref<1x128xf32, #tpu.memory_space<vmem>>, vector<1x128xf32>
    %87 = vector.broadcast %86 : vector<1x128xf32> to vector<32x128xf32>
    %88 = arith.addf %85, %87 : vector<32x128xf32>
    %cst_26 = arith.constant 2.000000e+01 : f32
    %89 = vector.broadcast %cst_26 : f32 to vector<32x128xf32>
    %90 = arith.cmpf ogt, %88, %89 : vector<32x128xf32>
    %cst_27 = arith.constant 2.000000e+01 : f32
    %91 = vector.broadcast %cst_27 : f32 to vector<32x128xf32>
    %92 = arith.minimumf %88, %91 : vector<32x128xf32>
    %93 = math.exp %92 : vector<32x128xf32>
    %94 = math.log1p %93 : vector<32x128xf32>
    %95 = arith.select %90, %88, %94 : vector<32x128xi1>, vector<32x128xf32>
    %c0_28 = arith.constant 0 : index
    %c0_29 = arith.constant 0 : index
    %96 = vector.load %arg6[%c0_28, %c0_29] : memref<32x128xf32, #tpu.memory_space<vmem>>, vector<32x128xf32>
    tpu.vector_store %arg6[%c0_28, %c0_29], %95 {strides = array<i32>} : memref<32x128xf32, #tpu.memory_space<vmem>>, vector<32x128xf32>,
    return
  }
  func.func @transform_0(%arg0: i32, %arg1: i32) -> (i32, i32) {
    %c0_i32 = arith.constant 0 : i32
    %c0_i32_0 = arith.constant 0 : i32
    return %arg0, %c0_i32 : i32, i32
  }
  func.func @transform_1(%arg0: i32, %arg1: i32) -> (i32, i32) {
    %c0_i32 = arith.constant 0 : i32
    %c0_i32_0 = arith.constant 0 : i32
    return %arg0, %c0_i32 : i32, i32
  }
  func.func @transform_2(%arg0: i32, %arg1: i32) -> (i32, i32) {
    %c0_i32 = arith.constant 0 : i32
    %c0_i32_0 = arith.constant 0 : i32
    return %c0_i32, %arg1 : i32, i32
  }
  func.func @transform_3(%arg0: i32, %arg1: i32) -> (i32, i32) {
    %c0_i32 = arith.constant 0 : i32
    %c0_i32_0 = arith.constant 0 : i32
    return %c0_i32, %arg1 : i32, i32
  }
  func.func @transform_4(%arg0: i32, %arg1: i32) -> (i32, i32) {
    %c0_i32 = arith.constant 0 : i32
    return %arg0, %arg1 : i32, i32
  }
}

</mosaic_0001>

<llo_original>
// kernel: tpu_custom_call.1
$region0: #{tpu_custom_call.1}
  #allocation0 [shape = 'u32[]', space=smem, size = 0x4, offset = 0x4, fixed_abs, tag = 'smem constant byte address 0x4 - core index']
  #allocation1 [shape = 'u32[144,128]{1,0:T(1,128)}', space=vmem, size = 0x12000, scoped, tag = 'internal scratch']
  #allocation2 [shape = 'bf16[32,512]{1,0:T(16,128)(2,1)}', space=vmem, size = 0x8000, scoped, tag = 'scratch operand']
  %s0 = inlined_call_operand.hbm [shape: bf16[32,32], index: 0, kind: input, shape index: {}]
  %s1 = inlined_call_operand.hbm [shape: f32[32,16], index: 1, kind: input, shape index: {}]
  %s2 = inlined_call_operand.hbm [shape: bf16[512,128], index: 2, kind: input, shape index: {}]
  %s3 = inlined_call_operand.hbm [shape: f32[1,128], index: 3, kind: input, shape index: {}]
  %s4 = inlined_call_operand.hbm [shape: f32[32,128], index: 4, kind: output, shape index: {}]
  %s5 = sld [smem:[#allocation0]]
  $region42: #{tpu_custom_call.1} parent=0
    _
  %s7 = ssub.s32 1, %s5
  %s8 = scalar_select 0, %s7, %s5
  $region1: #{tpu_custom_call.1} parent=0
    #allocation3 [shape = 'u8[8192]{0}', space=vmem, size = 0x2000, scoped, tag = 'input window, operand 0, single buffered']
    #allocation4 [shape = 's32[1]{0}', space=sflag, size = 0x4, scoped, tag = 'scoped memory for tpu_custom_call.1']
    #allocation5 [shape = 's32[1]{0}', space=sflag, size = 0x4, scoped, tag = 'scoped memory for tpu_custom_call.1']
    #allocation6 [shape = 'u8[16384]{0}', space=vmem, size = 0x4000, scoped, tag = 'input window, operand 1, single buffered']
    #allocation7 [shape = 's32[1]{0}', space=sflag, size = 0x4, scoped, tag = 'scoped memory for tpu_custom_call.1']
    #allocation8 [shape = 'u8[131072]{0}', space=vmem, size = 0x20000, scoped, tag = 'input window, operand 2, single buffered']
    #allocation9 [shape = 'u8[512]{0}', space=vmem, size = 0x400, scoped, tag = 'input window, operand 3, single buffered']
    #allocation10 [shape = 's32[1]{0}', space=sflag, size = 0x4, scoped, tag = 'scoped memory for tpu_custom_call.1']
    #allocation11 [shape = 'u8[16384]{0}', space=vmem, size = 0x4000, scoped, tag = 'output window, operand 0, single buffered']
    %9 = vsyncpa [#allocation4], 0
    %10 = vsyncpa [#allocation7], 0
    %11 = vsyncpa [#allocation10], 0
    %12 = vsyncpa [#allocation5], 0
    // Predicated region
    $region2: #{tpu_custom_call.1} parent=1 // pred_check
      _
    $region3: #{tpu_custom_call.1} parent=1 // pred_check_branch
      %14 = sbr.rel (0) target = $region5
    $region4: #{tpu_custom_call.1} parent=1 // pred_region
      %s16 = ssub.s32 256, 256
      %17 = vsyncadd [#allocation4], %s16
      %s18 = sshll.u32 [#allocation3], 4
      %s19 = int_to_ptr.vmem [resolvable:$true] %s18
      %24 = dma.hbm_to_vmem [thread:$0]  %s0, 256, %s19, [#allocation4], 64, 64, 4
    $region5: #{tpu_custom_call.1} parent=1 // pred_fallthru
      _
    // Predicated region
    $region6: #{tpu_custom_call.1} parent=1 // pred_check
      _
    $region7: #{tpu_custom_call.1} parent=1 // pred_check_branch
      %26 = sbr.rel (0) target = $region9
    $region8: #{tpu_custom_call.1} parent=1 // pred_region
      %s28 = ssub.s32 512, 512
      %29 = vsyncadd [#allocation7], %s28
      %s30 = sshll.u32 [#allocation6], 4
      %s31 = int_to_ptr.vmem [resolvable:$true] %s30
      %36 = dma.hbm_to_vmem [thread:$0]  %s1, 512, %s31, [#allocation7], 128, 128, 8
    $region9: #{tpu_custom_call.1} parent=1 // pred_fallthru
      _
    // Predicated region
    $region10: #{tpu_custom_call.1} parent=1 // pred_check
      _
    $region11: #{tpu_custom_call.1} parent=1 // pred_check_branch
      %38 = sbr.rel (0) target = $region13
    $region12: #{tpu_custom_call.1} parent=1 // pred_region
      %s40 = ssub.s32 4096, 4096
      %41 = vsyncadd [#allocation7], %s40
      %s42 = sshll.u32 [#allocation8], 4
      %s43 = int_to_ptr.vmem [resolvable:$true] %s42
      %48 = dma.hbm_to_vmem [thread:$0]  %s2, 4096, %s43, [#allocation7], 64, 64, 4
    $region13: #{tpu_custom_call.1} parent=1 // pred_fallthru
      _
    // Predicated region
    $region14: #{tpu_custom_call.1} parent=1 // pred_check
      _
    $region15: #{tpu_custom_call.1} parent=1 // pred_check_branch
      %50 = sbr.rel (0) target = $region17
    $region16: #{tpu_custom_call.1} parent=1 // pred_region
      %s52 = ssub.s32 16, 16
      %53 = vsyncadd [#allocation10], %s52
      %s55 = sshll.u32 [#allocation9], 4
      %s56 = int_to_ptr.vmem [resolvable:$true] %s55
      %58 = dma.hbm_to_vmem [thread:$0]  %s3, 16, %s56, [#allocation10]
    $region17: #{tpu_custom_call.1} parent=1 // pred_fallthru
      _
    // Predicated region
    $region18: #{tpu_custom_call.1} parent=1 // pred_check
      _
    $region19: #{tpu_custom_call.1} parent=1 // pred_check_branch
      %60 = sbr.rel (0) target = $region21
    $region20: #{tpu_custom_call.1} parent=1 // pred_region
      %61 = dma.done [#allocation4], 256
    $region21: #{tpu_custom_call.1} parent=1 // pred_fallthru
      _
    // Predicated region
    $region22: #{tpu_custom_call.1} parent=1 // pred_check
      _
    $region23: #{tpu_custom_call.1} parent=1 // pred_check_branch
      %63 = sbr.rel (0) target = $region25
    $region24: #{tpu_custom_call.1} parent=1 // pred_region
      %64 = dma.done [#allocation7], 512
    $region25: #{tpu_custom_call.1} parent=1 // pred_fallthru
      _
    // Predicated region
    $region26: #{tpu_custom_call.1} parent=1 // pred_check
      _
    $region27: #{tpu_custom_call.1} parent=1 // pred_check_branch
      %66 = sbr.rel (0) target = $region29
    $region28: #{tpu_custom_call.1} parent=1 // pred_region
      %67 = dma.done [#allocation7], 4096
    $region29: #{tpu_custom_call.1} parent=1 // pred_fallthru
      _
    // Predicated region
    $region30: #{tpu_custom_call.1} parent=1 // pred_check
      _
    $region31: #{tpu_custom_call.1} parent=1 // pred_check_branch
      %69 = sbr.rel (0) target = $region33
    $region32: #{tpu_custom_call.1} parent=1 // pred_region
      %70 = dma.done [#allocation10], 16
    $region33: #{tpu_custom_call.1} parent=1 // pred_fallthru
      _
    %v72 = vld [vmem:[#allocation3] sm:$0xf]
    %v73 = vld [vmem:[#allocation3 + $0x4] sm:$0xf]
    %v74 = vld [vmem:[#allocation3 + $0x8] sm:$0xf]
    %v75 = vld [vmem:[#allocation3 + $0xc] sm:$0xf]
    %v76 = vunpack.c.l.bf16 %v72
    %v77 = vunpack.c.l.bf16 %v73
    %v78 = vunpack.c.l.bf16 %v74
    %v79 = vunpack.c.l.bf16 %v75
    %v80 = vld [vmem:[#allocation6] sm:$0xff]
    %v81 = vld [vmem:[#allocation6 + $0x8] sm:$0xff]
    %v82 = vld [vmem:[#allocation6 + $0x10] sm:$0xff]
    %v83 = vld [vmem:[#allocation6 + $0x18] sm:$0xff]
    %85 = vset.pattern.permute.xlu0 0
    %86 = vperm.xlu0 %85, %v80
    %v87 = vpop.permute.xlu0 %86
    %90 = vset.pattern.permute.xlu0 0
    %91 = vperm.xlu0 %90, %v81
    %v92 = vpop.permute.xlu0 %91
    %95 = vset.pattern.permute.xlu0 0
    %96 = vperm.xlu0 %95, %v82
    %v97 = vpop.permute.xlu0 %96
    %100 = vset.pattern.permute.xlu0 0
    %101 = vperm.xlu0 %100, %v83
    %v102 = vpop.permute.xlu0 %101
    %v104 = vmul.f32 %v76, %v87
    %v105 = vmul.f32 %v77, %v92
    %v106 = vmul.f32 %v78, %v97
    %v107 = vmul.f32 %v79, %v102
    %v108 = vpack.c.bf16 %v105, %v104
    %v109 = vpack.c.bf16 %v107, %v106
    %vm110 = vcmask 261120
    %111 = vst.msk [vmem:[#allocation2] sm:$0xff] %vm110, %v108
    %112 = vst.msk [vmem:[#allocation2 + $0x20] sm:$0xff] %vm110, %v109
    %113 = vset.pattern.permute.xlu0 1
    %114 = vperm.xlu0 %113, %v80
    %v115 = vpop.permute.xlu0 %114
    %117 = vset.pattern.permute.xlu0 1
    %118 = vperm.xlu0 %117, %v81
    %v119 = vpop.permute.xlu0 %118
    %121 = vset.pattern.permute.xlu0 1
    %122 = vperm.xlu0 %121, %v82
    %v123 = vpop.permute.xlu0 %122
    %125 = vset.pattern.permute.xlu0 1
    %126 = vperm.xlu0 %125, %v83
    %v127 = vpop.permute.xlu0 %126
    %v129 = vmul.f32 %v76, %v115
    %v130 = vmul.f32 %v77, %v119
    %v131 = vmul.f32 %v78, %v123
    %v132 = vmul.f32 %v79, %v127
    %v133 = vpack.c.bf16 %v130, %v129
    %v134 = vpack.c.bf16 %v132, %v131
    %137 = vrot.lane.b32.xlu0 %v133, 32
    %v138 = vpop.permute.xlu0 %137
    %139 = vrot.lane.b32.xlu0 %v134, 32
    %v140 = vpop.permute.xlu0 %139
    %vm143 = vcmask 523520
    %144 = vst.msk [vmem:[#allocation2] sm:$0xff] %vm143, %v138
    %145 = vst.msk [vmem:[#allocation2 + $0x20] sm:$0xff] %vm143, %v140
    %146 = vset.pattern.permute.xlu0 2
    %147 = vperm.xlu0 %146, %v80
    %v148 = vpop.permute.xlu0 %147
    %150 = vset.pattern.permute.xlu0 2
    %151 = vperm.xlu0 %150, %v81
    %v152 = vpop.permute.xlu0 %151
    %154 = vset.pattern.permute.xlu0 2
    %155 = vperm.xlu0 %154, %v82
    %v156 = vpop.permute.xlu0 %155
    %158 = vset.pattern.permute.xlu0 2
    %159 = vperm.xlu0 %158, %v83
    %v160 = vpop.permute.xlu0 %159
    %v162 = vmul.f32 %v76, %v148
    %v163 = vmul.f32 %v77, %v152
    %v164 = vmul.f32 %v78, %v156
    %v165 = vmul.f32 %v79, %v160
    %v166 = vpack.c.bf16 %v163, %v162
    %v167 = vpack.c.bf16 %v165, %v164
    %170 = vrot.lane.b32.xlu0 %v166, 64
    %v171 = vpop.permute.xlu0 %170
    %172 = vrot.lane.b32.xlu0 %v167, 64
    %v173 = vpop.permute.xlu0 %172
    %vm176 = vcmask 785920
    %177 = vst.msk [vmem:[#allocation2] sm:$0xff] %vm176, %v171
    %178 = vst.msk [vmem:[#allocation2 + $0x20] sm:$0xff] %vm176, %v173
    %179 = vset.pattern.permute.xlu0 3
    %180 = vperm.xlu0 %179, %v80
    %v181 = vpop.permute.xlu0 %180
    %183 = vset.pattern.permute.xlu0 3
    %184 = vperm.xlu0 %183, %v81
    %v185 = vpop.permute.xlu0 %184
    %187 = vset.pattern.permute.xlu0 3
    %188 = vperm.xlu0 %187, %v82
    %v189 = vpop.permute.xlu0 %188
    %191 = vset.pattern.permute.xlu0 3
    %192 = vperm.xlu0 %191, %v83
    %v193 = vpop.permute.xlu0 %192
    %v195 = vmul.f32 %v76, %v181
    %v196 = vmul.f32 %v77, %v185
    %v197 = vmul.f32 %v78, %v189
    %v198 = vmul.f32 %v79, %v193
    %v199 = vpack.c.bf16 %v196, %v195
    %v200 = vpack.c.bf16 %v198, %v197
    %203 = vrot.lane.b32.xlu0 %v199, 96
    %v204 = vpop.permute.xlu0 %203
    %205 = vrot.lane.b32.xlu0 %v200, 96
    %v206 = vpop.permute.xlu0 %205
    %vm209 = vcmask 1048320
    %210 = vst.msk [vmem:[#allocation2] sm:$0xff] %vm209, %v204
    %211 = vst.msk [vmem:[#allocation2 + $0x20] sm:$0xff] %vm209, %v206
    %212 = vset.pattern.permute.xlu0 4
    %213 = vperm.xlu0 %212, %v80
    %v214 = vpop.permute.xlu0 %213
    %216 = vset.pattern.permute.xlu0 4
    %217 = vperm.xlu0 %216, %v81
    %v218 = vpop.permute.xlu0 %217
    %220 = vset.pattern.permute.xlu0 4
    %221 = vperm.xlu0 %220, %v82
    %v222 = vpop.permute.xlu0 %221
    %224 = vset.pattern.permute.xlu0 4
    %225 = vperm.xlu0 %224, %v83
    %v226 = vpop.permute.xlu0 %225
    %v228 = vmul.f32 %v76, %v214
    %v229 = vmul.f32 %v77, %v218
    %v230 = vmul.f32 %v78, %v222
    %v231 = vmul.f32 %v79, %v226
    %v232 = vpack.c.bf16 %v229, %v228
    %v233 = vpack.c.bf16 %v231, %v230
    %234 = vst.msk [vmem:[#allocation2 + $0x8] sm:$0xff] %vm110, %v232
    %235 = vst.msk [vmem:[#allocation2 + $0x28] sm:$0xff] %vm110, %v233
    %236 = vset.pattern.permute.xlu0 5
    %237 = vperm.xlu0 %236, %v80
    %v238 = vpop.permute.xlu0 %237
    %240 = vset.pattern.permute.xlu0 5
    %241 = vperm.xlu0 %240, %v81
    %v242 = vpop.permute.xlu0 %241
    %244 = vset.pattern.permute.xlu0 5
    %245 = vperm.xlu0 %244, %v82
    %v246 = vpop.permute.xlu0 %245
    %248 = vset.pattern.permute.xlu0 5
    %249 = vperm.xlu0 %248, %v83
    %v250 = vpop.permute.xlu0 %249
    %v252 = vmul.f32 %v76, %v238
    %v253 = vmul.f32 %v77, %v242
    %v254 = vmul.f32 %v78, %v246
    %v255 = vmul.f32 %v79, %v250
    %v256 = vpack.c.bf16 %v253, %v252
    %v257 = vpack.c.bf16 %v255, %v254
    %260 = vrot.lane.b32.xlu0 %v256, 32
    %v261 = vpop.permute.xlu0 %260
    %262 = vrot.lane.b32.xlu0 %v257, 32
    %v263 = vpop.permute.xlu0 %262
    %266 = vst.msk [vmem:[#allocation2 + $0x8] sm:$0xff] %vm143, %v261
    %267 = vst.msk [vmem:[#allocation2 + $0x28] sm:$0xff] %vm143, %v263
    %268 = vset.pattern.permute.xlu0 6
    %269 = vperm.xlu0 %268, %v80
    %v270 = vpop.permute.xlu0 %269
    %272 = vset.pattern.permute.xlu0 6
    %273 = vperm.xlu0 %272, %v81
    %v274 = vpop.permute.xlu0 %273
    %276 = vset.pattern.permute.xlu0 6
    %277 = vperm.xlu0 %276, %v82
    %v278 = vpop.permute.xlu0 %277
    %280 = vset.pattern.permute.xlu0 6
    %281 = vperm.xlu0 %280, %v83
    %v282 = vpop.permute.xlu0 %281
    %v284 = vmul.f32 %v76, %v270
    %v285 = vmul.f32 %v77, %v274
    %v286 = vmul.f32 %v78, %v278
    %v287 = vmul.f32 %v79, %v282
    %v288 = vpack.c.bf16 %v285, %v284
    %v289 = vpack.c.bf16 %v287, %v286
    %292 = vrot.lane.b32.xlu0 %v288, 64
    %v293 = vpop.permute.xlu0 %292
    %294 = vrot.lane.b32.xlu0 %v289, 64
    %v295 = vpop.permute.xlu0 %294
    %298 = vst.msk [vmem:[#allocation2 + $0x8] sm:$0xff] %vm176, %v293
    %299 = vst.msk [vmem:[#allocation2 + $0x28] sm:$0xff] %vm176, %v295
    %300 = vset.pattern.permute.xlu0 7
    %301 = vperm.xlu0 %300, %v80
    %v302 = vpop.permute.xlu0 %301
    %304 = vset.pattern.permute.xlu0 7
    %305 = vperm.xlu0 %304, %v81
    %v306 = vpop.permute.xlu0 %305
    %308 = vset.pattern.permute.xlu0 7
    %309 = vperm.xlu0 %308, %v82
    %v310 = vpop.permute.xlu0 %309
    %312 = vset.pattern.permute.xlu0 7
    %313 = vperm.xlu0 %312, %v83
    %v314 = vpop.permute.xlu0 %313
    %v316 = vmul.f32 %v76, %v302
    %v317 = vmul.f32 %v77, %v306
    %v318 = vmul.f32 %v78, %v310
    %v319 = vmul.f32 %v79, %v314
    %v320 = vpack.c.bf16 %v317, %v316
    %v321 = vpack.c.bf16 %v319, %v318
    %324 = vrot.lane.b32.xlu0 %v320, 96
    %v325 = vpop.permute.xlu0 %324
    %326 = vrot.lane.b32.xlu0 %v321, 96
    %v327 = vpop.permute.xlu0 %326
    %330 = vst.msk [vmem:[#allocation2 + $0x8] sm:$0xff] %vm209, %v325
    %331 = vst.msk [vmem:[#allocation2 + $0x28] sm:$0xff] %vm209, %v327
    %332 = vset.pattern.permute.xlu0 8
    %333 = vperm.xlu0 %332, %v80
    %v334 = vpop.permute.xlu0 %333
    %336 = vset.pattern.permute.xlu0 8
    %337 = vperm.xlu0 %336, %v81
    %v338 = vpop.permute.xlu0 %337
    %340 = vset.pattern.permute.xlu0 8
    %341 = vperm.xlu0 %340, %v82
    %v342 = vpop.permute.xlu0 %341
    %344 = vset.pattern.permute.xlu0 8
    %345 = vperm.xlu0 %344, %v83
    %v346 = vpop.permute.xlu0 %345
    %v348 = vmul.f32 %v76, %v334
    %v349 = vmul.f32 %v77, %v338
    %v350 = vmul.f32 %v78, %v342
    %v351 = vmul.f32 %v79, %v346
    %v352 = vpack.c.bf16 %v349, %v348
    %v353 = vpack.c.bf16 %v351, %v350
    %354 = vst.msk [vmem:[#allocation2 + $0x10] sm:$0xff] %vm110, %v352
    %355 = vst.msk [vmem:[#allocation2 + $0x30] sm:$0xff] %vm110, %v353
    %356 = vset.pattern.permute.xlu0 9
    %357 = vperm.xlu0 %356, %v80
    %v358 = vpop.permute.xlu0 %357
    %360 = vset.pattern.permute.xlu0 9
    %361 = vperm.xlu0 %360, %v81
    %v362 = vpop.permute.xlu0 %361
    %364 = vset.pattern.permute.xlu0 9
    %365 = vperm.xlu0 %364, %v82
    %v366 = vpop.permute.xlu0 %365
    %368 = vset.pattern.permute.xlu0 9
    %369 = vperm.xlu0 %368, %v83
    %v370 = vpop.permute.xlu0 %369
    %v372 = vmul.f32 %v76, %v358
    %v373 = vmul.f32 %v77, %v362
    %v374 = vmul.f32 %v78, %v366
    %v375 = vmul.f32 %v79, %v370
    %v376 = vpack.c.bf16 %v373, %v372
    %v377 = vpack.c.bf16 %v375, %v374
    %380 = vrot.lane.b32.xlu0 %v376, 32
    %v381 = vpop.permute.xlu0 %380
    %382 = vrot.lane.b32.xlu0 %v377, 32
    %v383 = vpop.permute.xlu0 %382
    %386 = vst.msk [vmem:[#allocation2 + $0x10] sm:$0xff] %vm143, %v381
    %387 = vst.msk [vmem:[#allocation2 + $0x30] sm:$0xff] %vm143, %v383
    %388 = vset.pattern.permute.xlu0 10
    %389 = vperm.xlu0 %388, %v80
    %v390 = vpop.permute.xlu0 %389
    %392 = vset.pattern.permute.xlu0 10
    %393 = vperm.xlu0 %392, %v81
    %v394 = vpop.permute.xlu0 %393
    %396 = vset.pattern.permute.xlu0 10
    %397 = vperm.xlu0 %396, %v82
    %v398 = vpop.permute.xlu0 %397
    %400 = vset.pattern.permute.xlu0 10
    %401 = vperm.xlu0 %400, %v83
    %v402 = vpop.permute.xlu0 %401
    %v404 = vmul.f32 %v76, %v390
    %v405 = vmul.f32 %v77, %v394
    %v406 = vmul.f32 %v78, %v398
    %v407 = vmul.f32 %v79, %v402
    %v408 = vpack.c.bf16 %v405, %v404
    %v409 = vpack.c.bf16 %v407, %v406
    %412 = vrot.lane.b32.xlu0 %v408, 64
    %v413 = vpop.permute.xlu0 %412
    %414 = vrot.lane.b32.xlu0 %v409, 64
    %v415 = vpop.permute.xlu0 %414
    %418 = vst.msk [vmem:[#allocation2 + $0x10] sm:$0xff] %vm176, %v413
    %419 = vst.msk [vmem:[#allocation2 + $0x30] sm:$0xff] %vm176, %v415
    %420 = vset.pattern.permute.xlu0 11
    %421 = vperm.xlu0 %420, %v80
    %v422 = vpop.permute.xlu0 %421
    %424 = vset.pattern.permute.xlu0 11
    %425 = vperm.xlu0 %424, %v81
    %v426 = vpop.permute.xlu0 %425
    %428 = vset.pattern.permute.xlu0 11
    %429 = vperm.xlu0 %428, %v82
    %v430 = vpop.permute.xlu0 %429
    %432 = vset.pattern.permute.xlu0 11
    %433 = vperm.xlu0 %432, %v83
    %v434 = vpop.permute.xlu0 %433
    %v436 = vmul.f32 %v76, %v422
    %v437 = vmul.f32 %v77, %v426
    %v438 = vmul.f32 %v78, %v430
    %v439 = vmul.f32 %v79, %v434
    %v440 = vpack.c.bf16 %v437, %v436
    %v441 = vpack.c.bf16 %v439, %v438
    %444 = vrot.lane.b32.xlu0 %v440, 96
    %v445 = vpop.permute.xlu0 %444
    %446 = vrot.lane.b32.xlu0 %v441, 96
    %v447 = vpop.permute.xlu0 %446
    %450 = vst.msk [vmem:[#allocation2 + $0x10] sm:$0xff] %vm209, %v445
    %451 = vst.msk [vmem:[#allocation2 + $0x30] sm:$0xff] %vm209, %v447
    %452 = vset.pattern.permute.xlu0 12
    %453 = vperm.xlu0 %452, %v80
    %v454 = vpop.permute.xlu0 %453
    %456 = vset.pattern.permute.xlu0 12
    %457 = vperm.xlu0 %456, %v81
    %v458 = vpop.permute.xlu0 %457
    %460 = vset.pattern.permute.xlu0 12
    %461 = vperm.xlu0 %460, %v82
    %v462 = vpop.permute.xlu0 %461
    %464 = vset.pattern.permute.xlu0 12
    %465 = vperm.xlu0 %464, %v83
    %v466 = vpop.permute.xlu0 %465
    %v468 = vmul.f32 %v76, %v454
    %v469 = vmul.f32 %v77, %v458
    %v470 = vmul.f32 %v78, %v462
    %v471 = vmul.f32 %v79, %v466
    %v472 = vpack.c.bf16 %v469, %v468
    %v473 = vpack.c.bf16 %v471, %v470
    %474 = vst.msk [vmem:[#allocation2 + $0x18] sm:$0xff] %vm110, %v472
    %475 = vst.msk [vmem:[#allocation2 + $0x38] sm:$0xff] %vm110, %v473
    %476 = vset.pattern.permute.xlu0 13
    %477 = vperm.xlu0 %476, %v80
    %v478 = vpop.permute.xlu0 %477
    %480 = vset.pattern.permute.xlu0 13
    %481 = vperm.xlu0 %480, %v81
    %v482 = vpop.permute.xlu0 %481
    %484 = vset.pattern.permute.xlu0 13
    %485 = vperm.xlu0 %484, %v82
    %v486 = vpop.permute.xlu0 %485
    %488 = vset.pattern.permute.xlu0 13
    %489 = vperm.xlu0 %488, %v83
    %v490 = vpop.permute.xlu0 %489
    %v492 = vmul.f32 %v76, %v478
    %v493 = vmul.f32 %v77, %v482
    %v494 = vmul.f32 %v78, %v486
    %v495 = vmul.f32 %v79, %v490
    %v496 = vpack.c.bf16 %v493, %v492
    %v497 = vpack.c.bf16 %v495, %v494
    %500 = vrot.lane.b32.xlu0 %v496, 32
    %v501 = vpop.permute.xlu0 %500
    %502 = vrot.lane.b32.xlu0 %v497, 32
    %v503 = vpop.permute.xlu0 %502
    %506 = vst.msk [vmem:[#allocation2 + $0x18] sm:$0xff] %vm143, %v501
    %507 = vst.msk [vmem:[#allocation2 + $0x38] sm:$0xff] %vm143, %v503
    %508 = vset.pattern.permute.xlu0 14
    %509 = vperm.xlu0 %508, %v80
    %v510 = vpop.permute.xlu0 %509
    %512 = vset.pattern.permute.xlu0 14
    %513 = vperm.xlu0 %512, %v81
    %v514 = vpop.permute.xlu0 %513
    %516 = vset.pattern.permute.xlu0 14
    %517 = vperm.xlu0 %516, %v82
    %v518 = vpop.permute.xlu0 %517
    %520 = vset.pattern.permute.xlu0 14
    %521 = vperm.xlu0 %520, %v83
    %v522 = vpop.permute.xlu0 %521
    %v524 = vmul.f32 %v76, %v510
    %v525 = vmul.f32 %v77, %v514
    %v526 = vmul.f32 %v78, %v518
    %v527 = vmul.f32 %v79, %v522
    %v528 = vpack.c.bf16 %v525, %v524
    %v529 = vpack.c.bf16 %v527, %v526
    %532 = vrot.lane.b32.xlu0 %v528, 64
    %v533 = vpop.permute.xlu0 %532
    %534 = vrot.lane.b32.xlu0 %v529, 64
    %v535 = vpop.permute.xlu0 %534
    %538 = vst.msk [vmem:[#allocation2 + $0x18] sm:$0xff] %vm176, %v533
    %539 = vst.msk [vmem:[#allocation2 + $0x38] sm:$0xff] %vm176, %v535
    %540 = vset.pattern.permute.xlu0 15
    %541 = vperm.xlu0 %540, %v80
    %v542 = vpop.permute.xlu0 %541
    %544 = vset.pattern.permute.xlu0 15
    %545 = vperm.xlu0 %544, %v81
    %v546 = vpop.permute.xlu0 %545
    %548 = vset.pattern.permute.xlu0 15
    %549 = vperm.xlu0 %548, %v82
    %v550 = vpop.permute.xlu0 %549
    %552 = vset.pattern.permute.xlu0 15
    %553 = vperm.xlu0 %552, %v83
    %v554 = vpop.permute.xlu0 %553
    %v556 = vmul.f32 %v76, %v542
    %v557 = vmul.f32 %v77, %v546
    %v558 = vmul.f32 %v78, %v550
    %v559 = vmul.f32 %v79, %v554
    %v560 = vpack.c.bf16 %v557, %v556
    %v561 = vpack.c.bf16 %v559, %v558
    %564 = vrot.lane.b32.xlu0 %v560, 96
    %v565 = vpop.permute.xlu0 %564
    %566 = vrot.lane.b32.xlu0 %v561, 96
    %v567 = vpop.permute.xlu0 %566
    %570 = vst.msk [vmem:[#allocation2 + $0x18] sm:$0xff] %vm209, %v565
    %571 = vst.msk [vmem:[#allocation2 + $0x38] sm:$0xff] %vm209, %v567
    %v572 = vld [vmem:[#allocation2] sm:$0xff]
    %v573 = vld [vmem:[#allocation2 + $0x8] sm:$0xff]
    %v574 = vld [vmem:[#allocation2 + $0x10] sm:$0xff]
    %v575 = vld [vmem:[#allocation2 + $0x18] sm:$0xff]
    %v576 = vld [vmem:[#allocation2 + $0x20] sm:$0xff]
    %v577 = vld [vmem:[#allocation2 + $0x28] sm:$0xff]
    %v578 = vld [vmem:[#allocation2 + $0x30] sm:$0xff]
    %v579 = vld [vmem:[#allocation2 + $0x38] sm:$0xff]
    %v580 = vld [vmem:[#allocation8] sm:$0xf]
    %v581 = vld [vmem:[#allocation8 + $0x4] sm:$0xf]
    %v582 = vld [vmem:[#allocation8 + $0x8] sm:$0xf]
    %v583 = vld [vmem:[#allocation8 + $0xc] sm:$0xf]
    %v584 = vld [vmem:[#allocation8 + $0x10] sm:$0xf]
    %v585 = vld [vmem:[#allocation8 + $0x14] sm:$0xf]
    %v586 = vld [vmem:[#allocation8 + $0x18] sm:$0xf]
    %v587 = vld [vmem:[#allocation8 + $0x1c] sm:$0xf]
    %v588 = vld [vmem:[#allocation8 + $0x20] sm:$0xf]
    %v589 = vld [vmem:[#allocation8 + $0x24] sm:$0xf]
    %v590 = vld [vmem:[#allocation8 + $0x28] sm:$0xf]
    %v591 = vld [vmem:[#allocation8 + $0x2c] sm:$0xf]
    %v592 = vld [vmem:[#allocation8 + $0x30] sm:$0xf]
    %v593 = vld [vmem:[#allocation8 + $0x34] sm:$0xf]
    %v594 = vld [vmem:[#allocation8 + $0x38] sm:$0xf]
    %v595 = vld [vmem:[#allocation8 + $0x3c] sm:$0xf]
    %v596 = vld [vmem:[#allocation8 + $0x40] sm:$0xf]
    %v597 = vld [vmem:[#allocation8 + $0x44] sm:$0xf]
    %v598 = vld [vmem:[#allocation8 + $0x48] sm:$0xf]
    %v599 = vld [vmem:[#allocation8 + $0x4c] sm:$0xf]
    %v600 = vld [vmem:[#allocation8 + $0x50] sm:$0xf]
    %v601 = vld [vmem:[#allocation8 + $0x54] sm:$0xf]
    %v602 = vld [vmem:[#allocation8 + $0x58] sm:$0xf]
    %v603 = vld [vmem:[#allocation8 + $0x5c] sm:$0xf]
    %v604 = vld [vmem:[#allocation8 + $0x60] sm:$0xf]
    %v605 = vld [vmem:[#allocation8 + $0x64] sm:$0xf]
    %v606 = vld [vmem:[#allocation8 + $0x68] sm:$0xf]
    %v607 = vld [vmem:[#allocation8 + $0x6c] sm:$0xf]
    %v608 = vld [vmem:[#allocation8 + $0x70] sm:$0xf]
    %v609 = vld [vmem:[#allocation8 + $0x74] sm:$0xf]
    %v610 = vld [vmem:[#allocation8 + $0x78] sm:$0xf]
    %v611 = vld [vmem:[#allocation8 + $0x7c] sm:$0xf]
    %v612 = vld [vmem:[#allocation8 + $0x80] sm:$0xf]
    %v613 = vld [vmem:[#allocation8 + $0x84] sm:$0xf]
    %v614 = vld [vmem:[#allocation8 + $0x88] sm:$0xf]
    %v615 = vld [vmem:[#allocation8 + $0x8c] sm:$0xf]
    %v616 = vld [vmem:[#allocation8 + $0x90] sm:$0xf]
    %v617 = vld [vmem:[#allocation8 + $0x94] sm:$0xf]
    %v618 = vld [vmem:[#allocation8 + $0x98] sm:$0xf]
    %v619 = vld [vmem:[#allocation8 + $0x9c] sm:$0xf]
    %v620 = vld [vmem:[#allocation8 + $0xa0] sm:$0xf]
    %v621 = vld [vmem:[#allocation8 + $0xa4] sm:$0xf]
    %v622 = vld [vmem:[#allocation8 + $0xa8] sm:$0xf]
    %v623 = vld [vmem:[#allocation8 + $0xac] sm:$0xf]
    %v624 = vld [vmem:[#allocation8 + $0xb0] sm:$0xf]
    %v625 = vld [vmem:[#allocation8 + $0xb4] sm:$0xf]
    %v626 = vld [vmem:[#allocation8 + $0xb8] sm:$0xf]
    %v627 = vld [vmem:[#allocation8 + $0xbc] sm:$0xf]
    %v628 = vld [vmem:[#allocation8 + $0xc0] sm:$0xf]
    %v629 = vld [vmem:[#allocation8 + $0xc4] sm:$0xf]
    %v630 = vld [vmem:[#allocation8 + $0xc8] sm:$0xf]
    %v631 = vld [vmem:[#allocation8 + $0xcc] sm:$0xf]
    %v632 = vld [vmem:[#allocation8 + $0xd0] sm:$0xf]
    %v633 = vld [vmem:[#allocation8 + $0xd4] sm:$0xf]
    %v634 = vld [vmem:[#allocation8 + $0xd8] sm:$0xf]
    %v635 = vld [vmem:[#allocation8 + $0xdc] sm:$0xf]
    %v636 = vld [vmem:[#allocation8 + $0xe0] sm:$0xf]
    %v637 = vld [vmem:[#allocation8 + $0xe4] sm:$0xf]
    %v638 = vld [vmem:[#allocation8 + $0xe8] sm:$0xf]
    %v639 = vld [vmem:[#allocation8 + $0xec] sm:$0xf]
    %v640 = vld [vmem:[#allocation8 + $0xf0] sm:$0xf]
    %v641 = vld [vmem:[#allocation8 + $0xf4] sm:$0xf]
    %v642 = vld [vmem:[#allocation8 + $0xf8] sm:$0xf]
    %v643 = vld [vmem:[#allocation8 + $0xfc] sm:$0xf]
    %v644 = vld [vmem:[#allocation9] sm:$0x1]
    %v646 = vlaneseq
    %v647 = vshrl.u32 %v646, 7
    %v648 = vsub.s32 0, %v647
    %v649 = vrot.slane %v644, %v648
    %v715 = vunpack.c.l.b16 %v580
    %v716 = vunpack.c.l.b16 %v581
    %v717 = vunpack.c.l.b16 %v582
    %v718 = vunpack.c.l.b16 %v583
    %v719 = vunpack.c.l.b16 %v584
    %v720 = vunpack.c.l.b16 %v585
    %v721 = vunpack.c.l.b16 %v586
    %v722 = vunpack.c.l.b16 %v587
    %v723 = vunpack.c.l.b16 %v588
    %v724 = vunpack.c.l.b16 %v589
    %v725 = vunpack.c.l.b16 %v590
    %v726 = vunpack.c.l.b16 %v591
    %v727 = vunpack.c.l.b16 %v592
    %v728 = vunpack.c.l.b16 %v593
    %v729 = vunpack.c.l.b16 %v594
    %v730 = vunpack.c.l.b16 %v595
    %v731 = vunpack.c.l.b16 %v596
    %v732 = vunpack.c.l.b16 %v597
    %v733 = vunpack.c.l.b16 %v598
    %v734 = vunpack.c.l.b16 %v599
    %v735 = vunpack.c.l.b16 %v600
    %v736 = vunpack.c.l.b16 %v601
    %v737 = vunpack.c.l.b16 %v602
    %v738 = vunpack.c.l.b16 %v603
    %v739 = vunpack.c.l.b16 %v604
    %v740 = vunpack.c.l.b16 %v605
    %v741 = vunpack.c.l.b16 %v606
    %v742 = vunpack.c.l.b16 %v607
    %v743 = vunpack.c.l.b16 %v608
    %v744 = vunpack.c.l.b16 %v609
    %v745 = vunpack.c.l.b16 %v610
    %v746 = vunpack.c.l.b16 %v611
    %v747 = vunpack.c.l.b16 %v612
    %v748 = vunpack.c.l.b16 %v613
    %v749 = vunpack.c.l.b16 %v614
    %v750 = vunpack.c.l.b16 %v615
    %v751 = vunpack.c.l.b16 %v616
    %v752 = vunpack.c.l.b16 %v617
    %v753 = vunpack.c.l.b16 %v618
    %v754 = vunpack.c.l.b16 %v619
    %v755 = vunpack.c.l.b16 %v620
    %v756 = vunpack.c.l.b16 %v621
    %v757 = vunpack.c.l.b16 %v622
    %v758 = vunpack.c.l.b16 %v623
    %v759 = vunpack.c.l.b16 %v624
    %v760 = vunpack.c.l.b16 %v625
    %v761 = vunpack.c.l.b16 %v626
    %v762 = vunpack.c.l.b16 %v627
    %v763 = vunpack.c.l.b16 %v628
    %v764 = vunpack.c.l.b16 %v629
    %v765 = vunpack.c.l.b16 %v630
    %v766 = vunpack.c.l.b16 %v631
    %v767 = vunpack.c.l.b16 %v632
    %v768 = vunpack.c.l.b16 %v633
    %v769 = vunpack.c.l.b16 %v634
    %v770 = vunpack.c.l.b16 %v635
    %v771 = vunpack.c.l.b16 %v636
    %v772 = vunpack.c.l.b16 %v637
    %v773 = vunpack.c.l.b16 %v638
    %v774 = vunpack.c.l.b16 %v639
    %v775 = vunpack.c.l.b16 %v640
    %v776 = vunpack.c.l.b16 %v641
    %v777 = vunpack.c.l.b16 %v642
    %v778 = vunpack.c.l.b16 %v643
    %v779 = vpack.c.b16 %v716, %v715
    %v780 = vpack.c.b16 %v718, %v717
    %v781 = vpack.c.b16 %v720, %v719
    %v782 = vpack.c.b16 %v722, %v721
    %v783 = vpack.c.b16 %v724, %v723
    %v784 = vpack.c.b16 %v726, %v725
    %v785 = vpack.c.b16 %v728, %v727
    %v786 = vpack.c.b16 %v730, %v729
    %v787 = vpack.c.b16 %v732, %v731
    %v788 = vpack.c.b16 %v734, %v733
    %v789 = vpack.c.b16 %v736, %v735
    %v790 = vpack.c.b16 %v738, %v737
    %v791 = vpack.c.b16 %v740, %v739
    %v792 = vpack.c.b16 %v742, %v741
    %v793 = vpack.c.b16 %v744, %v743
    %v794 = vpack.c.b16 %v746, %v745
    %v795 = vpack.c.b16 %v748, %v747
    %v796 = vpack.c.b16 %v750, %v749
    %v797 = vpack.c.b16 %v752, %v751
    %v798 = vpack.c.b16 %v754, %v753
    %v799 = vpack.c.b16 %v756, %v755
    %v800 = vpack.c.b16 %v758, %v757
    %v801 = vpack.c.b16 %v760, %v759
    %v802 = vpack.c.b16 %v762, %v761
    %v803 = vpack.c.b16 %v764, %v763
    %v804 = vpack.c.b16 %v766, %v765
    %v805 = vpack.c.b16 %v768, %v767
    %v806 = vpack.c.b16 %v770, %v769
    %v807 = vpack.c.b16 %v772, %v771
    %v808 = vpack.c.b16 %v774, %v773
    %v809 = vpack.c.b16 %v776, %v775
    %v810 = vpack.c.b16 %v778, %v777
    %843 = vmatprep.subr.bf16.mxu0 0
    %844 = vmatpush1.bf16.msra.mxu0 %v779
    %845 = vmatprep.subr.bf16.mxu0 0
    %846 = vmatpush1.bf16.msra.mxu0 %v780
    %847 = vmatprep.subr.bf16.mxu0 0
    %848 = vmatpush1.bf16.msra.mxu0 %v781
    %849 = vmatprep.subr.bf16.mxu0 0
    %850 = vmatpush1.bf16.msra.mxu0 %v782
    %851 = vmatprep.subr.bf16.mxu0 0
    %852 = vmatpush1.bf16.msra.mxu0 %v783
    %853 = vmatprep.subr.bf16.mxu0 0
    %854 = vmatpush1.bf16.msra.mxu0 %v784
    %855 = vmatprep.subr.bf16.mxu0 0
    %856 = vmatpush1.bf16.msra.mxu0 %v785
    %857 = vmatprep.subr.bf16.mxu0 0
    %858 = vmatpush1.bf16.msra.mxu0 %v786
    %859 = vmatprep.subr.bf16.mxu0 0
    %860 = vmatpush1.bf16.msra.mxu0 %v787
    %861 = vmatprep.subr.bf16.mxu0 0
    %862 = vmatpush1.bf16.msra.mxu0 %v788
    %863 = vmatprep.subr.bf16.mxu0 0
    %864 = vmatpush1.bf16.msra.mxu0 %v789
    %865 = vmatprep.subr.bf16.mxu0 0
    %866 = vmatpush1.bf16.msra.mxu0 %v790
    %867 = vmatprep.subr.bf16.mxu0 0
    %868 = vmatpush1.bf16.msra.mxu0 %v791
    %869 = vmatprep.subr.bf16.mxu0 0
    %870 = vmatpush1.bf16.msra.mxu0 %v792
    %871 = vmatprep.subr.bf16.mxu0 0
    %872 = vmatpush1.bf16.msra.mxu0 %v793
    %873 = vmatprep.subr.bf16.mxu0 0
    %874 = vmatpush1.bf16.msra.mxu0 %v794
    %875 = vmatprep.mubr.bf16.mxu0 %v573
    %876 = vmatmul.mubr.bf16.gmra.mrb[0].mxu0 %v572
    %v877 = vpop.f32.mrb[0].mxu0
    %v878 = vadd.f32 %v649, %v877
    %v879 = vpop.f32.mrb[0].mxu0
    %v880 = vpop.f32.mrb[0].mxu0
    %v881 = vadd.f32 %v649, %v880
    %v882 = vpop.f32.mrb[0].mxu0
    %883 = vmatprep.mubr.bf16.mxu0 %v577
    %884 = vmatmul.mubr.bf16.gmra.mrb[0].mxu0 %v576
    %v885 = vpop.f32.mrb[0].mxu0
    %v886 = vadd.f32 %v649, %v885
    %v887 = vpop.f32.mrb[0].mxu0
    %v888 = vpop.f32.mrb[0].mxu0
    %v889 = vadd.f32 %v649, %v888
    %v890 = vpop.f32.mrb[0].mxu0
    %891 = vdwg.mxu0
    %892 = vmatprep.subr.bf16.mxu0 0
    %893 = vmatpush1.bf16.msra.mxu0 %v795
    %894 = vmatprep.subr.bf16.mxu0 0
    %895 = vmatpush1.bf16.msra.mxu0 %v796
    %896 = vmatprep.subr.bf16.mxu0 0
    %897 = vmatpush1.bf16.msra.mxu0 %v797
    %898 = vmatprep.subr.bf16.mxu0 0
    %899 = vmatpush1.bf16.msra.mxu0 %v798
    %900 = vmatprep.subr.bf16.mxu0 0
    %901 = vmatpush1.bf16.msra.mxu0 %v799
    %902 = vmatprep.subr.bf16.mxu0 0
    %903 = vmatpush1.bf16.msra.mxu0 %v800
    %904 = vmatprep.subr.bf16.mxu0 0
    %905 = vmatpush1.bf16.msra.mxu0 %v801
    %906 = vmatprep.subr.bf16.mxu0 0
    %907 = vmatpush1.bf16.msra.mxu0 %v802
    %908 = vmatprep.subr.bf16.mxu0 0
    %909 = vmatpush1.bf16.msra.mxu0 %v803
    %910 = vmatprep.subr.bf16.mxu0 0
    %911 = vmatpush1.bf16.msra.mxu0 %v804
    %912 = vmatprep.subr.bf16.mxu0 0
    %913 = vmatpush1.bf16.msra.mxu0 %v805
    %914 = vmatprep.subr.bf16.mxu0 0
    %915 = vmatpush1.bf16.msra.mxu0 %v806
    %916 = vmatprep.subr.bf16.mxu0 0
    %917 = vmatpush1.bf16.msra.mxu0 %v807
    %918 = vmatprep.subr.bf16.mxu0 0
    %919 = vmatpush1.bf16.msra.mxu0 %v808
    %920 = vmatprep.subr.bf16.mxu0 0
    %921 = vmatpush1.bf16.msra.mxu0 %v809
    %922 = vmatprep.subr.bf16.mxu0 0
    %923 = vmatpush1.bf16.msra.mxu0 %v810
    %924 = vmatprep.mubr.bf16.mxu0 %v575
    %925 = vmatmul.mubr.bf16.gmra.mrb[0].mxu0 %v574
    %v926 = vpop.f32.mrb[0].mxu0
    %v927 = vadd.f32 %v878, %v926
    %v928 = vpop.f32.mrb[0].mxu0
    %v929 = vpop.f32.mrb[0].mxu0
    %v930 = vadd.f32 %v881, %v929
    %v931 = vpop.f32.mrb[0].mxu0
    %932 = vmatprep.mubr.bf16.mxu0 %v579
    %933 = vmatmul.mubr.bf16.gmra.mrb[0].mxu0 %v578
    %v934 = vpop.f32.mrb[0].mxu0
    %v935 = vadd.f32 %v886, %v934
    %v936 = vpop.f32.mrb[0].mxu0
    %v937 = vpop.f32.mrb[0].mxu0
    %v938 = vadd.f32 %v889, %v937
    %v939 = vpop.f32.mrb[0].mxu0
    %940 = vdwg.mxu0
    %vm941 = vcmp.gt.f32.partialorder %v927, 20.0
    %vm942 = vcmp.gt.f32.partialorder %v930, 20.0
    %vm943 = vcmp.gt.f32.partialorder %v935, 20.0
    %vm944 = vcmp.gt.f32.partialorder %v938, 20.0
    %v945 = vmin.f32 %v927, 20.0
    %v946 = vmin.f32 %v930, 20.0
    %v947 = vmin.f32 %v935, 20.0
    %v948 = vmin.f32 %v938, 20.0
    %v949 = vmul.f32 %v945, 1.442695
    %v950 = vpow.pop %v949
    %v951 = vmul.f32 %v946, 1.442695
    %v952 = vpow.pop %v951
    %v953 = vmul.f32 %v947, 1.442695
    %v954 = vpow.pop %v953
    %v955 = vmul.f32 %v948, 1.442695
    %v956 = vpow.pop %v955
    %v957 = vadd.f32 %v950, 1.0
    %v958 = vlog2.pop %v957
    %v959 = vmul.f32 %v958, 0.6931472
    %v960 = vmul.f32 -0.5, %v950
    %v961 = vadd.f32 %v960, 1.0
    %v962 = vmul.f32 %v961, %v950
    %v963 = vand.u32 2147483647, %v950
    %vm964 = vcmp.lt.f32.partialorder %v963, 0.0004427343
    %v965 = vsel %vm964, %v962, %v959
    %v966 = vadd.f32 %v952, 1.0
    %v967 = vlog2.pop %v966
    %v968 = vmul.f32 %v967, 0.6931472
    %v969 = vmul.f32 -0.5, %v952
    %v970 = vadd.f32 %v969, 1.0
    %v971 = vmul.f32 %v970, %v952
    %v972 = vand.u32 2147483647, %v952
    %vm973 = vcmp.lt.f32.partialorder %v972, 0.0004427343
    %v974 = vsel %vm973, %v971, %v968
    %v975 = vadd.f32 %v954, 1.0
    %v976 = vlog2.pop %v975
    %v977 = vmul.f32 %v976, 0.6931472
    %v978 = vmul.f32 -0.5, %v954
    %v979 = vadd.f32 %v978, 1.0
    %v980 = vmul.f32 %v979, %v954
    %v981 = vand.u32 2147483647, %v954
    %vm982 = vcmp.lt.f32.partialorder %v981, 0.0004427343
    %v983 = vsel %vm982, %v980, %v977
    %v984 = vadd.f32 %v956, 1.0
    %v985 = vlog2.pop %v984
    %v986 = vmul.f32 %v985, 0.6931472
    %v987 = vmul.f32 -0.5, %v956
    %v988 = vadd.f32 %v987, 1.0
    %v989 = vmul.f32 %v988, %v956
    %v990 = vand.u32 2147483647, %v956
    %vm991 = vcmp.lt.f32.partialorder %v990, 0.0004427343
    %v992 = vsel %vm991, %v989, %v986
    %v993 = vsel %vm941, %v927, %v965
    %v994 = vsel %vm942, %v930, %v974
    %v995 = vsel %vm943, %v935, %v983
    %v996 = vsel %vm944, %v938, %v992
    %997 = vst [vmem:[#allocation11] sm:$0xff] %v993
    %998 = vst [vmem:[#allocation11 + $0x8] sm:$0xff] %v994
    %999 = vst [vmem:[#allocation11 + $0x10] sm:$0xff] %v995
    %1000 = vst [vmem:[#allocation11 + $0x18] sm:$0xff] %v996
    // Predicated region
    $region34: #{tpu_custom_call.1} parent=1 // pred_check
      _
    $region35: #{tpu_custom_call.1} parent=1 // pred_check_branch
      %1002 = sbr.rel (0) target = $region37
    $region36: #{tpu_custom_call.1} parent=1 // pred_region
      %s1004 = ssub.s32 512, 512
      %1005 = vsyncadd [#allocation5], %s1004
      %s1006 = sshll.u32 [#allocation11], 4
      %s1007 = int_to_ptr.vmem [resolvable:$true] %s1006
      %1012 = dma.vmem_to_hbm [thread:$0]  %s1007, 512, %s4, [#allocation5], 128, 128, 8
    $region37: #{tpu_custom_call.1} parent=1 // pred_fallthru
      _
    // Predicated region
    $region38: #{tpu_custom_call.1} parent=1 // pred_check
      _
    $region39: #{tpu_custom_call.1} parent=1 // pred_check_branch
      %1014 = sbr.rel (0) target = $region41
    $region40: #{tpu_custom_call.1} parent=1 // pred_region
      %1015 = dma.done [#allocation5], 512
    $region41: #{tpu_custom_call.1} parent=1 // pred_fallthru
      _
    %1016 = vsyncpa [#allocation4], 1
    %1017 = vsyncpa [#allocation7], 1
    %1018 = vsyncpa [#allocation10], 1
    %1019 = vsyncpa [#allocation5], 1

</llo_original>
